<compile_context>
chip_gen: v5e
topology: v5e:2x2
jax: 0.10.0
libtpu: 0.0.40
codegen_flags: <defaults>
</compile_context>

<pallas_src>
import jax
import jax.numpy as jnp
from jax.experimental import pallas as pl
from jax.experimental.pallas import tpu as pltpu


def sgm_kernel(x_ref, w_ref, b_ref, o_ref):
    """One batch element per grid step.

    x_ref : (G, cg, HW)  input tile, lane-dense (HW multiple of 128)
    w_ref : (G, 1)       per-group scale (resident across grid)
    b_ref : (G, 1)       per-group shift (resident across grid)
    o_ref : (G, cg, HW)  output tile
    """
    xb = x_ref[...].astype(jnp.float32)                 # (G, cg, HW)
    hw = xb.shape[2]

    # Per-channel spatial mean (AdaptiveAvgPool2d(1)) -> lane reduction (XLU).
    m = jnp.mean(xb, axis=2, keepdims=True)             # (G, cg, 1)

    # Channel-weighted sum: xn[g, s] = sum_ch x[g, ch, s] * mean[g, ch].
    xn = jnp.sum(xb * m, axis=1)                        # (G, HW)

    # Normalize over the spatial dim (unbiased std, matches torch.Tensor.std).
    mu = jnp.mean(xn, axis=1, keepdims=True)            # (G, 1)
    t = xn - mu
    var = jnp.sum(t * t, axis=1, keepdims=True) / jnp.float32(hw - 1)
    t = t * jax.lax.rsqrt(var)                          # (G, HW)

    # Per-group affine + sigmoid gate (EUP handles exp).
    t = t * w_ref[...] + b_ref[...]                     # (G,1) bcast over HW
    gate = 1.0 / (1.0 + jnp.exp(-t))                    # (G, HW)

    # Scale every channel of the group by its gate.
    o_ref[...] = (xb * gate[:, None, :]).astype(o_ref.dtype)


def spectral_group_mixing_pallas(x, weight, bias, groups):
    """x: (B, C, H, W) float; weight/bias: (1, groups, 1, 1) float."""
    B, C, H, W = x.shape
    assert C % groups == 0, "channels must be divisible by groups"
    cg = C // groups
    HW = H * W
    # TODO(synk): if H*W is not a multiple of 128, pad the spatial dim in the
    # wrapper; shapes implied by the module (16x16 -> 256) need no padding.

    # Lane-dense view: spatial flattened into the last (lane) dim.
    xg = x.reshape(B, groups, cg, HW)
    w2 = weight.reshape(groups, 1).astype(jnp.float32)
    b2 = bias.reshape(groups, 1).astype(jnp.float32)

    out = pl.pallas_call(
        sgm_kernel,
        out_shape=jax.ShapeDtypeStruct((B, groups, cg, HW), x.dtype),
        grid_spec=pltpu.PrefetchScalarGridSpec(
            num_scalar_prefetch=0,
            grid=(B,),
            in_specs=[
                pl.BlockSpec((pl.Squeezed(), groups, cg, HW),
                             lambda i: (i, 0, 0, 0)),
                pl.BlockSpec((groups, 1), lambda i: (0, 0)),
                pl.BlockSpec((groups, 1), lambda i: (0, 0)),
            ],
            out_specs=pl.BlockSpec((pl.Squeezed(), groups, cg, HW),
                                   lambda i: (i, 0, 0, 0)),
        ),
        compiler_params=pltpu.CompilerParams(
            dimension_semantics=("parallel",)),
    )(xg, w2, b2)

    return out.reshape(B, C, H, W)


def spectral_group_mixing_reference(x, weight, bias, groups):
    """Pure-JAX reference matching the PyTorch forward."""
    B, C, H, W = x.shape
    cg = C // groups
    xg = x.reshape(B * groups, cg, H, W)
    m = jnp.mean(xg, axis=(2, 3), keepdims=True)                 # avg_pool(x)
    xn = jnp.sum(xg * m, axis=1, keepdims=True)                  # (B*G,1,H,W)
    t = xn.reshape(B * groups, -1)
    t = t - jnp.mean(t, axis=1, keepdims=True)
    std = jnp.std(t, axis=1, keepdims=True, ddof=1)              # unbiased
    t = t / std
    t = t.reshape(B, groups, H, W)
    t = t * weight.reshape(1, groups, 1, 1) + bias.reshape(1, groups, 1, 1)
    t = t.reshape(B * groups, 1, H, W)
    xg = xg * jax.nn.sigmoid(t)
    return xg.reshape(B, C, H, W)


if __name__ == "__main__":
    # Module config: groups = 2, input (B, C, H, W) = (2, 4, 16, 16).
    B, C, H, W = 2, 4, 16, 16
    G = 2

    key = jax.random.PRNGKey(0)
    kx, kw, kb = jax.random.split(key, 3)

    x = jax.random.normal(kx, (B, C, H, W), dtype=jnp.float32)
    # NOTE: the nn.Module initializes weight/bias to zero (gate == 0.5 always);
    # random values are used here to exercise the full data path.
    weight = 0.5 * jax.random.normal(kw, (1, G, 1, 1), dtype=jnp.float32)
    bias = 0.5 * jax.random.normal(kb, (1, G, 1, 1), dtype=jnp.float32)

    out = spectral_group_mixing_pallas(x, weight, bias, G)
    out = jax.block_until_ready(out)

    ref = spectral_group_mixing_reference(x, weight, bias, G)
    assert out.shape == (B, C, H, W)
    assert jnp.allclose(out, ref, atol=1e-4, rtol=1e-4), "mismatch vs reference"

    print("KERNEL_OK")
</pallas_src>

<mosaic_0001>
module attributes {stable_mosaic.version = 11 : i64} {
  func.func @sgm_kernel(%arg0: i32, %arg1: memref<1x2x2x256xf32, #tpu.memory_space<vmem>>, %arg2: memref<2x1xf32, #tpu.memory_space<vmem>>, %arg3: memref<2x1xf32, #tpu.memory_space<vmem>>, %arg4: memref<1x2x2x256xf32, #tpu.memory_space<vmem>>) attributes {dimension_semantics = [#tpu.dimension_semantics<parallel>], iteration_bounds = array<i64: 2>, scalar_prefetch = 0 : i64, scratch_operands = 0 : i64, tpu.core_type = #tpu.core_type<tc>, window_params = [{transform_indices = @transform_0, window_bounds = array<i64: 1, 2, 2, 256>}, {pipeline_mode = #tpu.pipeline_mode<synchronous>, transform_indices = @transform_1, window_bounds = array<i64: 2, 1>}, {pipeline_mode = #tpu.pipeline_mode<synchronous>, transform_indices = @transform_2, window_bounds = array<i64: 2, 1>}, {transform_indices = @transform_3, window_bounds = array<i64: 1, 2, 2, 256>}]} {
    %c0 = arith.constant 0 : index
    %c0_0 = arith.constant 0 : index
    %c0_1 = arith.constant 0 : index
    %c0_2 = arith.constant 0 : index
    %0 = vector.load %arg1[%c0, %c0_0, %c0_1, %c0_2] : memref<1x2x2x256xf32, #tpu.memory_space<vmem>>, vector<1x2x2x256xf32>
    %1 = vector.shape_cast %0 : vector<1x2x2x256xf32> to vector<2x2x256xf32>
    %cst = arith.constant dense<0.000000e+00> : vector<2x2xf32>
    %2 = vector.multi_reduction <add>, %1, %cst [2] : vector<2x2x256xf32> to vector<2x2xf32>
    %3 = vector.shape_cast %2 : vector<2x2xf32> to vector<2x2x1xf32>
    %cst_3 = arith.constant 2.560000e+02 : f32
    %4 = vector.broadcast %cst_3 : f32 to vector<2x2x1xf32>
    %5 = arith.divf %3, %4 : vector<2x2x1xf32>
    %6 = vector.broadcast %5 : vector<2x2x1xf32> to vector<2x2x256xf32>
    %7 = arith.mulf %1, %6 : vector<2x2x256xf32>
    %cst_4 = arith.constant dense<0.000000e+00> : vector<2x256xf32>
    %8 = vector.multi_reduction <add>, %7, %cst_4 [1] : vector<2x2x256xf32> to vector<2x256xf32>
    %cst_5 = arith.constant dense<0.000000e+00> : vector<2xf32>
    %9 = vector.multi_reduction <add>, %8, %cst_5 [1] : vector<2x256xf32> to vector<2xf32>
    %10 = vector.shape_cast %9 : vector<2xf32> to vector<2x1xf32>
    %cst_6 = arith.constant 2.560000e+02 : f32
    %11 = vector.broadcast %cst_6 : f32 to vector<2x1xf32>
    %12 = arith.divf %10, %11 : vector<2x1xf32>
    %13 = vector.broadcast %12 : vector<2x1xf32> to vector<2x256xf32>
    %14 = arith.subf %8, %13 : vector<2x256xf32>
    %15 = arith.mulf %14, %14 : vector<2x256xf32>
    %cst_7 = arith.constant dense<0.000000e+00> : vector<2xf32>
    %16 = vector.multi_reduction <add>, %15, %cst_7 [1] : vector<2x256xf32> to vector<2xf32>
    %17 = vector.shape_cast %16 : vector<2xf32> to vector<2x1xf32>
    %cst_8 = arith.constant 2.550000e+02 : f32
    %18 = vector.broadcast %cst_8 : f32 to vector<2x1xf32>
    %19 = arith.divf %17, %18 : vector<2x1xf32>
    %20 = math.rsqrt %19 : vector<2x1xf32>
    %21 = vector.broadcast %20 : vector<2x1xf32> to vector<2x256xf32>
    %22 = arith.mulf %14, %21 : vector<2x256xf32>
    %c0_9 = arith.constant 0 : index
    %c0_10 = arith.constant 0 : index
    %23 = vector.load %arg2[%c0_9, %c0_10] : memref<2x1xf32, #tpu.memory_space<vmem>>, vector<2x1xf32>
    %24 = vector.broadcast %23 : vector<2x1xf32> to vector<2x256xf32>
    %25 = arith.mulf %22, %24 : vector<2x256xf32>
    %c0_11 = arith.constant 0 : index
    %c0_12 = arith.constant 0 : index
    %26 = vector.load %arg3[%c0_11, %c0_12] : memref<2x1xf32, #tpu.memory_space<vmem>>, vector<2x1xf32>
    %27 = vector.broadcast %26 : vector<2x1xf32> to vector<2x256xf32>
    %28 = arith.addf %25, %27 : vector<2x256xf32>
    %cst_13 = arith.constant 0.000000e+00 : f32
    %29 = vector.broadcast %cst_13 : f32 to vector<2x256xf32>
    %30 = arith.subf %29, %28 : vector<2x256xf32>
    %31 = math.exp %30 : vector<2x256xf32>
    %cst_14 = arith.constant 1.000000e+00 : f32
    %32 = vector.broadcast %cst_14 : f32 to vector<2x256xf32>
    %33 = arith.addf %32, %31 : vector<2x256xf32>
    %cst_15 = arith.constant 1.000000e+00 : f32
    %34 = vector.broadcast %cst_15 : f32 to vector<2x256xf32>
    %35 = arith.divf %34, %33 : vector<2x256xf32>
    %36 = vector.shape_cast %35 : vector<2x256xf32> to vector<2x1x256xf32>
    %37 = vector.broadcast %36 : vector<2x1x256xf32> to vector<2x2x256xf32>
    %38 = arith.mulf %1, %37 : vector<2x2x256xf32>
    %c0_16 = arith.constant 0 : index
    %c0_17 = arith.constant 0 : index
    %c0_18 = arith.constant 0 : index
    %c0_19 = arith.constant 0 : index
    %39 = vector.load %arg4[%c0_16, %c0_17, %c0_18, %c0_19] : memref<1x2x2x256xf32, #tpu.memory_space<vmem>>, vector<1x2x2x256xf32>
    %40 = vector.shape_cast %39 : vector<1x2x2x256xf32> to vector<2x2x256xf32>
    %41 = vector.shape_cast %38 : vector<2x2x256xf32> to vector<1x2x2x256xf32>
    tpu.vector_store %arg4[%c0_16, %c0_17, %c0_18, %c0_19], %41 {strides = array<i32>} : memref<1x2x2x256xf32, #tpu.memory_space<vmem>>, vector<1x2x2x256xf32>,
    return
  }
  func.func @transform_0(%arg0: i32) -> (i32, i32, i32, i32) {
    %c0_i32 = arith.constant 0 : i32
    %c0_i32_0 = arith.constant 0 : i32
    %c0_i32_1 = arith.constant 0 : i32
    %c0_i32_2 = arith.constant 0 : i32
    return %arg0, %c0_i32, %c0_i32_0, %c0_i32_1 : i32, i32, i32, i32
  }
  func.func @transform_1(%arg0: i32) -> (i32, i32) {
    %c0_i32 = arith.constant 0 : i32
    %c0_i32_0 = arith.constant 0 : i32
    %c0_i32_1 = arith.constant 0 : i32
    return %c0_i32, %c0_i32_0 : i32, i32
  }
  func.func @transform_2(%arg0: i32) -> (i32, i32) {
    %c0_i32 = arith.constant 0 : i32
    %c0_i32_0 = arith.constant 0 : i32
    %c0_i32_1 = arith.constant 0 : i32
    return %c0_i32, %c0_i32_0 : i32, i32
  }
  func.func @transform_3(%arg0: i32) -> (i32, i32, i32, i32) {
    %c0_i32 = arith.constant 0 : i32
    %c0_i32_0 = arith.constant 0 : i32
    %c0_i32_1 = arith.constant 0 : i32
    %c0_i32_2 = arith.constant 0 : i32
    return %arg0, %c0_i32, %c0_i32_0, %c0_i32_1 : i32, i32, i32, i32
  }
}

</mosaic_0001>

<llo_original>
// kernel: tpu_custom_call.1
$region0: #{tpu_custom_call.1}
  #allocation0 [shape = 'u32[]', space=smem, size = 0x4, offset = 0x4, fixed_abs, tag = 'smem constant byte address 0x4 - core index']
  #allocation1 [shape = 'u32[72,128]{1,0:T(1,128)}', space=vmem, size = 0x9000, scoped, tag = 'internal scratch']
  %s0 = inlined_call_operand.hbm [shape: f32[2,2,2,256], index: 0, kind: input, shape index: {}]
  %s1 = inlined_call_operand.vmem [shape: f32[2,1], index: 1, kind: input, shape index: {}]
  %s2 = inlined_call_operand.vmem [shape: f32[2,1], index: 2, kind: input, shape index: {}]
  %s3 = inlined_call_operand.hbm [shape: f32[2,2,2,256], index: 3, kind: output, shape index: {}]
  %s4 = sld [smem:[#allocation0]]
  $region49: #{tpu_custom_call.1} parent=0
    _
  %s6 = ssub.s32 1, %s4
  %s7 = scalar_select 0, %s6, %s4
  $region1: #{tpu_custom_call.1} parent=0
    #allocation2 [shape = 'u8[8192]{0}', space=vmem, size = 0x2000, scoped, tag = 'input window, operand 0']
    #allocation3 [shape = 's32[2]{0}', space=sflag, size = 0x8, scoped, tag = 'scoped memory for tpu_custom_call.1']
    #allocation4 [shape = 's32[2]{0}', space=sflag, size = 0x8, scoped, tag = 'scoped memory for tpu_custom_call.1']
    #allocation5 [shape = 'u8[8192]{0}', space=vmem, size = 0x2000, scoped, tag = 'output window, operand 0']
    %8 = vsyncpa [#allocation3], 0
    %s9 = scalar_lea.sflag [#allocation3], 1
    %10 = vsyncpa %s9, 0
    %11 = vsyncpa [#allocation4], 0
    %s12 = scalar_lea.sflag [#allocation4], 1
    %13 = vsyncpa %s12, 0
    loop: start=0, step=1, limit=4
    $region2: #{tpu_custom_call.1} parent=1 // loop_pre_header
      _
    $region3: #{tpu_custom_call.1} parent=1 // loop_header
      %s15 = sphi 0, %s19
      %p16 = scmp.ge.s32.totalorder %s15, 4
      %s25 = sphi 0, %s27
      %s28 = sphi 0, %s25
      %s29 = sphi 0, %s28
      %s45 = sphi 0, %s29
      %s49 = sphi 0, %s49
      %s51 = sphi 0, %s49
      %s52 = sphi 0, %s51
      %s66 = sphi 0, %s52
      %s70 = sphi 0, %s70
      %s72 = sphi 0, %s70
      %s73 = sphi 0, %s72
      %s87 = sphi 0, %s73
      %s93 = sphi 0, %s95
      %s96 = sphi 0, %s93
      %s97 = sphi 0, %s96
      %s113 = sphi 0, %s97
    $region4: #{tpu_custom_call.1} parent=1 // loop_header_branch
      %18 = sbr.rel (%p16) target = $region8
    $region5: #{tpu_custom_call.1} parent=1 // loop_body
      %s20 = ssub.s32 %s15, 1
      %s21 = ssub.s32 %s15, 2
      %s22 = sadd.s32 %s15, 1
      %s23 = ssub.s32 %s15, %s22
      %p24 = scmp.eq.s32.totalorder %s23, 0
      %s26 = sadd.s32 %s25, 1
      %s27 = scalar_select %p24, %s25, %s26
      %p30 = pneg %p24
      %p31 = scmp.eq.s32.totalorder %s15, 1
      %p32 = por %p30, %p31
      %p33 = scmp.ne.s32.totalorder %s25, %s28
      %p34 = scmp.eq.s32.totalorder %s15, 0
      %p35 = por %p33, %p34
      %p36 = scmp.ne.s32.totalorder %s25, %s28
      %p37 = scmp.eq.s32.totalorder %s20, 1
      %p38 = por %p36, %p37
      %p39 = scmp.ne.s32.totalorder %s28, %s29
      %p40 = scmp.eq.s32.totalorder %s20, 0
      %p41 = por %p39, %p40
      %p42 = scmp.ne.s32.totalorder %s28, %s29
      %p43 = scmp.eq.s32.totalorder %s21, 1
      %p44 = por %p42, %p43
      %p46 = scmp.ne.s32.totalorder %s29, %s45
      %p47 = scmp.eq.s32.totalorder %s21, 0
      %p48 = por %p46, %p47
      %s50 = sadd.s32 %s49, 1
      %p53 = scmp.eq.s32.totalorder %s15, 1
      %p54 = scmp.ne.s32.totalorder %s49, %s51
      %p55 = scmp.eq.s32.totalorder %s15, 0
      %p56 = por %p54, %p55
      %p57 = scmp.ne.s32.totalorder %s49, %s51
      %p58 = scmp.eq.s32.totalorder %s20, 1
      %p59 = por %p57, %p58
      %p60 = scmp.ne.s32.totalorder %s51, %s52
      %p61 = scmp.eq.s32.totalorder %s20, 0
      %p62 = por %p60, %p61
      %p63 = scmp.ne.s32.totalorder %s51, %s52
      %p64 = scmp.eq.s32.totalorder %s21, 1
      %p65 = por %p63, %p64
      %p67 = scmp.ne.s32.totalorder %s52, %s66
      %p68 = scmp.eq.s32.totalorder %s21, 0
      %p69 = por %p67, %p68
      %s71 = sadd.s32 %s70, 1
      %p74 = scmp.eq.s32.totalorder %s15, 1
      %p75 = scmp.ne.s32.totalorder %s70, %s72
      %p76 = scmp.eq.s32.totalorder %s15, 0
      %p77 = por %p75, %p76
      %p78 = scmp.ne.s32.totalorder %s70, %s72
      %p79 = scmp.eq.s32.totalorder %s20, 1
      %p80 = por %p78, %p79
      %p81 = scmp.ne.s32.totalorder %s72, %s73
      %p82 = scmp.eq.s32.totalorder %s20, 0
      %p83 = por %p81, %p82
      %p84 = scmp.ne.s32.totalorder %s72, %s73
      %p85 = scmp.eq.s32.totalorder %s21, 1
      %p86 = por %p84, %p85
      %p88 = scmp.ne.s32.totalorder %s73, %s87
      %p89 = scmp.eq.s32.totalorder %s21, 0
      %p90 = por %p88, %p89
      %s91 = ssub.s32 %s15, %s22
      %p92 = scmp.eq.s32.totalorder %s91, 0
      %s94 = sadd.s32 %s93, 1
      %s95 = scalar_select %p92, %s93, %s94
      %p98 = pneg %p92
      %p99 = scmp.eq.s32.totalorder %s15, 1
      %p100 = por %p98, %p99
      %p101 = scmp.ne.s32.totalorder %s93, %s96
      %p102 = scmp.eq.s32.totalorder %s15, 0
      %p103 = por %p101, %p102
      %p104 = scmp.ne.s32.totalorder %s93, %s96
      %p105 = scmp.eq.s32.totalorder %s20, 1
      %p106 = por %p104, %p105
      %p107 = scmp.ne.s32.totalorder %s96, %s97
      %p108 = scmp.eq.s32.totalorder %s20, 0
      %p109 = por %p107, %p108
      %p110 = scmp.ne.s32.totalorder %s96, %s97
      %p111 = scmp.eq.s32.totalorder %s21, 1
      %p112 = por %p110, %p111
      %p114 = scmp.ne.s32.totalorder %s97, %s113
      %p115 = scmp.eq.s32.totalorder %s21, 0
      %p116 = por %p114, %p115
      %p117 = scmp.le.s32.totalorder 1, %s15
      %p118 = scmp.lt.s32.totalorder %s15, 3
      %p119 = pnand %p117, %p118
      %p120 = pneg %p119
      // Predicated region
      $region9: #{tpu_custom_call.1} parent=5 // pred_check
        _
      $region10: #{tpu_custom_call.1} parent=5 // pred_check_branch
        %122 = sbr.rel (%p119) target = $region12
      $region11: #{tpu_custom_call.1} parent=5 // pred_region
        %s123 = ssub.s32 %s15, 1
        // Predicated region
        $region13: #{tpu_custom_call.1} parent=11 // pred_check
          %p124 = pneg %p62
        $region14: #{tpu_custom_call.1} parent=11 // pred_check_branch
          %126 = sbr.rel (%p124) target = $region16
        $region15: #{tpu_custom_call.1} parent=11 // pred_region
          _
        $region16: #{tpu_custom_call.1} parent=11 // pred_fallthru
          _
        // Predicated region
        $region17: #{tpu_custom_call.1} parent=11 // pred_check
          %p127 = pneg %p83
        $region18: #{tpu_custom_call.1} parent=11 // pred_check_branch
          %129 = sbr.rel (%p127) target = $region20
        $region19: #{tpu_custom_call.1} parent=11 // pred_region
          _
        $region20: #{tpu_custom_call.1} parent=11 // pred_fallthru
          _
      $region12: #{tpu_custom_call.1} parent=5 // pred_fallthru
        _
      %p130 = scmp.lt.s32.totalorder %s15, 2
      // Predicated region
      $region21: #{tpu_custom_call.1} parent=5 // pred_check
        %p131 = pneg %p130
      $region22: #{tpu_custom_call.1} parent=5 // pred_check_branch
        %133 = sbr.rel (%p131) target = $region24
      $region23: #{tpu_custom_call.1} parent=5 // pred_region
        // Predicated region
        $region25: #{tpu_custom_call.1} parent=23 // pred_check
          %p134 = pneg %p35
        $region26: #{tpu_custom_call.1} parent=23 // pred_check_branch
          %136 = sbr.rel (%p134) target = $region28
        $region27: #{tpu_custom_call.1} parent=23 // pred_region
          %s137 = sand.u32 %s25, 1
          %s138 = scalar_lea.sflag [#allocation3], %s137
          %s139 = sand.u32 %s25, 1
          %s140 = smul.addr %s139, 8
          %s141 = scalar_lea.vmem [#allocation2], %s140
          %143 = vsyncadd %s138, 0
          %s144 = smul.addr %s15, 4
          %s145 = smul.addr %s144, 2
          %s146 = scalar_lea.hbm %s0, %s145
          %s147 = sshll.u32 %s146, 4
          %s148 = int_to_ptr.hbm [resolvable:$true] %s147
          %s149 = sshll.u32 %s141, 4
          %s150 = int_to_ptr.vmem [resolvable:$true] %s149
          %155 = dma.hbm_to_vmem [thread:$0]  %s148, 128, %s150, %s138, 64, 64, 4
        $region28: #{tpu_custom_call.1} parent=23 // pred_fallthru
          _
      $region24: #{tpu_custom_call.1} parent=5 // pred_fallthru
        _
      %p156 = scmp.le.s32.totalorder 1, %s15
      %p157 = scmp.lt.s32.totalorder %s15, 3
      %p158 = pnand %p156, %p157
      %p159 = pneg %p158
      // Predicated region
      $region29: #{tpu_custom_call.1} parent=5 // pred_check
        _
      $region30: #{tpu_custom_call.1} parent=5 // pred_check_branch
        %161 = sbr.rel (%p158) target = $region32
      $region31: #{tpu_custom_call.1} parent=5 // pred_region
        %s162 = ssub.s32 %s15, 1
        %s163 = sand.u32 %s28, 1
        %s164 = scalar_lea.sflag [#allocation3], %s163
        %s165 = sand.u32 %s28, 1
        %s166 = smul.addr %s165, 8
        %s167 = scalar_lea.vmem [#allocation2], %s166
        // Predicated region
        $region33: #{tpu_custom_call.1} parent=31 // pred_check
          %p168 = pneg %p41
        $region34: #{tpu_custom_call.1} parent=31 // pred_check_branch
          %170 = sbr.rel (%p168) target = $region36
        $region35: #{tpu_custom_call.1} parent=31 // pred_region
          %172 = dma.done %s164, 128
        $region36: #{tpu_custom_call.1} parent=31 // pred_fallthru
          _
        %s173 = sand.u32 %s28, 1
        %s174 = scalar_lea.sflag [#allocation3], %s173
        %s175 = sand.u32 %s28, 1
        %s176 = smul.addr %s175, 8
        %s177 = scalar_lea.vmem [#allocation2], %s176
        %p178 = pneg %p41
        %p179 = pneg %p38
        %p180 = pneg %p62
        %p181 = pneg %p59
        %p182 = pneg %p83
        %p183 = pneg %p80
        %p184 = pneg %p109
        %p185 = pneg %p106
        %s186 = sand.u32 %s96, 1
        %s187 = scalar_lea.sflag [#allocation4], %s186
        %s188 = sand.u32 %s96, 1
        %s189 = smul.addr %s188, 8
        %s190 = scalar_lea.vmem [#allocation5], %s189
        %v191 = vld [vmem:[%s167] sm:$0xf]
        %v192 = vld [vmem:[%s167 + $0x4] sm:$0xf]
        %195 = vst [vmem:[#allocation1] ss:$4 sm:$0xff] %v191
        %v196 = vld.sshfl [vmem:[#allocation1] sm:$0xff pattern:$0x73625140]
        %v197 = vld.sshfl [vmem:[#allocation1 + $0x8] sm:$0xff pattern:$0x73625140]
        %s198 = scalar_lea.vmem [#allocation1], 32
        %199 = vst [vmem:[%s198] ss:$4 sm:$0xff] %v192
        %v200 = vld.sshfl [vmem:[#allocation1 + $0x20] sm:$0xff pattern:$0x73625140]
        %v201 = vld.sshfl [vmem:[#allocation1 + $0x28] sm:$0xff pattern:$0x73625140]
        %vm206 = vcmask 1041408
        %v207 = vsel %vm206, %v196, 0.0
        %v208 = vsel %vm206, %v197, 0.0
        %v209 = vadd.f32 %v207, %v208
        %210 = vadd.xlane.f32.xlu0 %v209
        %v211 = vpop.xlane.xlu0 %210
        %v212 = vsel %vm206, %v200, 0.0
        %v213 = vsel %vm206, %v201, 0.0
        %v214 = vadd.f32 %v212, %v213
        %215 = vadd.xlane.f32.xlu0 %v214
        %v216 = vpop.xlane.xlu0 %215
        %v217 = vrcp.pop 256.0
        %v218 = vmul.f32 256.0, %v217
        %v219 = vsub.f32 1.0, %v218
        %v220 = vmul.f32 %v217, %v219
        %v221 = vadd.f32 %v217, %v220
        %vm222 = vweird.f32 %v217
        %v223 = vsel %vm222, %v217, %v221
        %v224 = vmul.f32 %v211, %v223
        %v225 = vmul.f32 %v216, %v223
        %v229 = vunpack.c.l.s4 269488144
        %v230 = vunpack.c.0.s8 %v229
        %v231 = vperm.slane %v224, %v230
        %v233 = vunpack.c.l.s4 269488144
        %v234 = vunpack.c.0.s8 %v233
        %v235 = vperm.slane %v225, %v234
        %v238 = vmul.f32 %v191, %v231
        %v239 = vmul.f32 %v192, %v235
        %242 = vst [vmem:[#allocation1] ss:$4 sm:$0xff] %v238
        %v243 = vld.sshfl [vmem:[#allocation1] sm:$0xff pattern:$0x73625140]
        %v244 = vld.sshfl [vmem:[#allocation1 + $0x8] sm:$0xff pattern:$0x73625140]
        %s245 = scalar_lea.vmem [#allocation1], 32
        %246 = vst [vmem:[%s245] ss:$4 sm:$0xff] %v239
        %v247 = vld.sshfl [vmem:[#allocation1 + $0x20] sm:$0xff pattern:$0x73625140]
        %v248 = vld.sshfl [vmem:[#allocation1 + $0x28] sm:$0xff pattern:$0x73625140]
        %v253 = vsel %vm206, %v243, 0.0
        %v254 = vrot.slane %v253, 4
        %v255 = vadd.f32 %v253, %v254
        %v256 = vrot.slane %v255, 2
        %v257 = vadd.f32 %v255, %v256
        %v258 = vrot.slane %v257, 1
        %v259 = vadd.f32 %v257, %v258
        %v260 = vsel %vm206, %v244, 0.0
        %v261 = vrot.slane %v260, 4
        %v262 = vadd.f32 %v260, %v261
        %v263 = vrot.slane %v262, 2
        %v264 = vadd.f32 %v262, %v263
        %v265 = vrot.slane %v264, 1
        %v266 = vadd.f32 %v264, %v265
        %v267 = vsel %vm206, %v247, 0.0
        %v268 = vrot.slane %v267, 4
        %v269 = vadd.f32 %v267, %v268
        %v270 = vrot.slane %v269, 2
        %v271 = vadd.f32 %v269, %v270
        %v272 = vrot.slane %v271, 1
        %v273 = vadd.f32 %v271, %v272
        %v274 = vsel %vm206, %v248, 0.0
        %v275 = vrot.slane %v274, 4
        %v276 = vadd.f32 %v274, %v275
        %v277 = vrot.slane %v276, 2
        %v278 = vadd.f32 %v276, %v277
        %v279 = vrot.slane %v278, 1
        %v280 = vadd.f32 %v278, %v279
        %vm285 = vcmask 1041409
        %v286 = vsel %vm285, %v273, %v259
        %v287 = vsel %vm285, %v280, %v266
        %v290 = vsel %vm206, %v286, 0.0
        %v291 = vsel %vm206, %v287, 0.0
        %v292 = vadd.f32 %v290, %v291
        %293 = vadd.xlane.f32.xlu0 %v292
        %v294 = vpop.xlane.xlu0 %293
        %v295 = vmul.f32 %v294, %v223
        %v297 = vrot.slane %v295, 1
        %v300 = vsub.f32 %v259, %v295
        %v301 = vsub.f32 %v266, %v295
        %v302 = vsub.f32 %v273, %v297
        %v303 = vsub.f32 %v280, %v297
        %v304 = vmul.f32 %v300, %v300
        %v305 = vmul.f32 %v301, %v301
        %v306 = vmul.f32 %v302, %v302
        %v307 = vmul.f32 %v303, %v303
        %v312 = vrot.slane %v306, 7
        %v313 = vsel %vm285, %v312, %v304
        %v314 = vrot.slane %v307, 7
        %v315 = vsel %vm285, %v314, %v305
        %v318 = vsel %vm206, %v313, 0.0
        %v319 = vsel %vm206, %v315, 0.0
        %v320 = vadd.f32 %v318, %v319
        %321 = vadd.xlane.f32.xlu0 %v320
        %v322 = vpop.xlane.xlu0 %321
        %v323 = vrcp.pop 255.0
        %v324 = vmul.f32 255.0, %v323
        %v325 = vsub.f32 1.0, %v324
        %v326 = vmul.f32 %v323, %v325
        %v327 = vadd.f32 %v323, %v326
        %vm328 = vweird.f32 %v323
        %v329 = vsel %vm328, %v323, %v327
        %v330 = vmul.f32 %v322, %v329
        %v331 = vrsqrt.pop %v330
        %v332 = vmul.f32 %v331, %v330
        %v333 = vmul.f32 %v332, %v331
        %v334 = vmul.f32 0.5, %v333
        %v335 = vsub.f32 1.5, %v334
        %v336 = vmul.f32 %v331, %v335
        %vm337 = vweird.f32 %v330
        %vm338 = vweird.f32 %v331
        %vm339 = vmor %vm337, %vm338
        %v340 = vsel %vm339, %v331, %v336
        %v342 = vrot.slane %v340, 1
        %v345 = vmul.f32 %v300, %v340
        %v346 = vmul.f32 %v301, %v340
        %v347 = vmul.f32 %v302, %v342
        %v348 = vmul.f32 %v303, %v342
        %v349 = vld [vmem:[%s1] sm:$0x3]
        %351 = vset.pattern.permute.xlu0 0
        %352 = vperm.xlu0 %351, %v349
        %v353 = vpop.permute.xlu0 %352
        %v354 = vrot.slane %v353, 1
        %v357 = vmul.f32 %v345, %v353
        %v358 = vmul.f32 %v346, %v353
        %v359 = vmul.f32 %v347, %v354
        %v360 = vmul.f32 %v348, %v354
        %v361 = vld [vmem:[%s2] sm:$0x3]
        %363 = vset.pattern.permute.xlu0 0
        %364 = vperm.xlu0 %363, %v361
        %v365 = vpop.permute.xlu0 %364
        %v366 = vrot.slane %v365, 1
        %v369 = vadd.f32 %v357, %v365
        %v370 = vadd.f32 %v358, %v365
        %v371 = vadd.f32 %v359, %v366
        %v372 = vadd.f32 %v360, %v366
        %v373 = vsub.f32 0.0, %v369
        %v374 = vsub.f32 0.0, %v370
        %v375 = vsub.f32 0.0, %v371
        %v376 = vsub.f32 0.0, %v372
        %v377 = vmul.f32 %v373, 1.442695
        %v378 = vpow.pop %v377
        %v379 = vmul.f32 %v374, 1.442695
        %v380 = vpow.pop %v379
        %v381 = vmul.f32 %v375, 1.442695
        %v382 = vpow.pop %v381
        %v383 = vmul.f32 %v376, 1.442695
        %v384 = vpow.pop %v383
        %v385 = vadd.f32 %v378, 1.0
        %v386 = vadd.f32 %v380, 1.0
        %v387 = vadd.f32 %v382, 1.0
        %v388 = vadd.f32 %v384, 1.0
        %v389 = vrcp.pop %v385
        %v390 = vmul.f32 %v385, %v389
        %v391 = vsub.f32 1.0, %v390
        %v392 = vmul.f32 %v389, %v391
        %v393 = vadd.f32 %v389, %v392
        %vm394 = vweird.f32 %v385
        %vm395 = vweird.f32 %v389
        %vm396 = vmor %vm394, %vm395
        %v397 = vsel %vm396, %v389, %v393
        %v398 = vand.u32 2147483647, %v385
        %vm399 = vcmp.eq.f32.partialorder %v398, 8.507059e+37
        %v400 = vand.u32 %v385, 2147483648
        %v401 = vor.u32 1.1754944e-38, %v400
        %v402 = vsel %vm399, %v401, %v397
        %v403 = vmul.f32 1.0, %v402
        %v404 = vrcp.pop %v386
        %v405 = vmul.f32 %v386, %v404
        %v406 = vsub.f32 1.0, %v405
        %v407 = vmul.f32 %v404, %v406
        %v408 = vadd.f32 %v404, %v407
        %vm409 = vweird.f32 %v386
        %vm410 = vweird.f32 %v404
        %vm411 = vmor %vm409, %vm410
        %v412 = vsel %vm411, %v404, %v408
        %v413 = vand.u32 2147483647, %v386
        %vm414 = vcmp.eq.f32.partialorder %v413, 8.507059e+37
        %v415 = vand.u32 %v386, 2147483648
        %v416 = vor.u32 1.1754944e-38, %v415
        %v417 = vsel %vm414, %v416, %v412
        %v418 = vmul.f32 1.0, %v417
        %v419 = vrcp.pop %v387
        %v420 = vmul.f32 %v387, %v419
        %v421 = vsub.f32 1.0, %v420
        %v422 = vmul.f32 %v419, %v421
        %v423 = vadd.f32 %v419, %v422
        %vm424 = vweird.f32 %v387
        %vm425 = vweird.f32 %v419
        %vm426 = vmor %vm424, %vm425
        %v427 = vsel %vm426, %v419, %v423
        %v428 = vand.u32 2147483647, %v387
        %vm429 = vcmp.eq.f32.partialorder %v428, 8.507059e+37
        %v430 = vand.u32 %v387, 2147483648
        %v431 = vor.u32 1.1754944e-38, %v430
        %v432 = vsel %vm429, %v431, %v427
        %v433 = vmul.f32 1.0, %v432
        %v434 = vrcp.pop %v388
        %v435 = vmul.f32 %v388, %v434
        %v436 = vsub.f32 1.0, %v435
        %v437 = vmul.f32 %v434, %v436
        %v438 = vadd.f32 %v434, %v437
        %vm439 = vweird.f32 %v388
        %vm440 = vweird.f32 %v434
        %vm441 = vmor %vm439, %vm440
        %v442 = vsel %vm441, %v434, %v438
        %v443 = vand.u32 2147483647, %v388
        %vm444 = vcmp.eq.f32.partialorder %v443, 8.507059e+37
        %v445 = vand.u32 %v388, 2147483648
        %v446 = vor.u32 1.1754944e-38, %v445
        %v447 = vsel %vm444, %v446, %v442
        %v448 = vmul.f32 1.0, %v447
        %v449 = vperm.slane %v403, 0
        %v450 = vperm.slane %v418, 0
        %v451 = vperm.slane %v433, 0
        %v452 = vperm.slane %v448, 0
        %v457 = vrot.slane %v450, 6
        %v458 = vrot.slane %v452, 6
        %v459 = vsel %vm206, %v449, %v457
        %v460 = vsel %vm206, %v451, %v458
        %v463 = vmul.f32 %v191, %v459
        %v464 = vmul.f32 %v192, %v460
        %465 = vst [vmem:[%s190] sm:$0xf] %v463
        %466 = vst [vmem:[%s190 + $0x4] sm:$0xf] %v464
        %s467 = sand.u32 %s96, 1
        %s468 = scalar_lea.sflag [#allocation4], %s467
        %s469 = sand.u32 %s96, 1
        %s470 = smul.addr %s469, 8
        %s471 = scalar_lea.vmem [#allocation5], %s470
        // Predicated region
        $region37: #{tpu_custom_call.1} parent=31 // pred_check
          %p472 = pneg %p106
        $region38: #{tpu_custom_call.1} parent=31 // pred_check_branch
          %474 = sbr.rel (%p472) target = $region40
        $region39: #{tpu_custom_call.1} parent=31 // pred_region
          %476 = vsyncadd %s468, 0
          %s477 = smul.addr %s20, 4
          %s478 = smul.addr %s477, 2
          %s479 = scalar_lea.hbm %s3, %s478
          %s480 = sshll.u32 %s471, 4
          %s481 = int_to_ptr.vmem [resolvable:$true] %s480
          %s482 = sshll.u32 %s479, 4
          %s483 = int_to_ptr.hbm [resolvable:$true] %s482
          %488 = dma.vmem_to_hbm [thread:$0]  %s481, 128, %s483, %s468, 64, 64, 4
        $region40: #{tpu_custom_call.1} parent=31 // pred_fallthru
          _
      $region32: #{tpu_custom_call.1} parent=5 // pred_fallthru
        _
      %p489 = scmp.le.s32.totalorder 2, %s15
      // Predicated region
      $region41: #{tpu_custom_call.1} parent=5 // pred_check
        %p490 = pneg %p489
      $region42: #{tpu_custom_call.1} parent=5 // pred_check_branch
        %492 = sbr.rel (%p490) target = $region44
      $region43: #{tpu_custom_call.1} parent=5 // pred_region
        %s493 = ssub.s32 %s15, 2
        // Predicated region
        $region45: #{tpu_custom_call.1} parent=43 // pred_check
          %p494 = pneg %p112
        $region46: #{tpu_custom_call.1} parent=43 // pred_check_branch
          %496 = sbr.rel (%p494) target = $region48
        $region47: #{tpu_custom_call.1} parent=43 // pred_region
          %s497 = sand.u32 %s97, 1
          %s498 = scalar_lea.sflag [#allocation4], %s497
          %s499 = sand.u32 %s97, 1
          %s500 = smul.addr %s499, 8
          %s501 = scalar_lea.vmem [#allocation5], %s500
          %503 = dma.done %s498, 128
        $region48: #{tpu_custom_call.1} parent=43 // pred_fallthru
          _
      $region44: #{tpu_custom_call.1} parent=5 // pred_fallthru
        _
    $region6: #{tpu_custom_call.1} parent=1 // loop_footer
      %s19 = sadd.s32 1, %s15
    $region7: #{tpu_custom_call.1} parent=1 // loop_footer_branch
      %14 = sbr.rel target = $region3
    $region8: #{tpu_custom_call.1} parent=1 // loop_exit
      _
    %504 = vsyncpa [#allocation3], 1
    %s505 = scalar_lea.sflag [#allocation3], 1
    %506 = vsyncpa %s505, 1
    %507 = vsyncpa [#allocation4], 1
    %s508 = scalar_lea.sflag [#allocation4], 1
    %509 = vsyncpa %s508, 1

</llo_original>
